<compile_context>
chip_gen: v6e
topology: v6e:2x2x1
jax: 0.10.0
libtpu: 0.0.40
codegen_flags: <defaults>
</compile_context>

<pallas_src>
import jax
import jax.numpy as jnp
from jax.experimental import pallas as pl
from jax.experimental.pallas import tpu as pltpu


def _model_kernel(x_ref, w_ref, b_ref, o_ref):
    # x_ref: (F, I, TB)   lane-dense activations (batch on lanes)
    # w_ref: (H, F, I, 1) resident weights (constant index_map)
    # b_ref: (F, I, 1)    resident bias
    # o_ref: (F, I, TB)
    n_feat = x_ref.shape[0]
    n_hidden = w_ref.shape[0]

    w = w_ref[...].astype(jnp.float32)                            # (H, F, I, 1)
    b = b_ref[...].astype(jnp.float32)                            # (F, I, 1)
    x = [x_ref[f].astype(jnp.float32) for f in range(n_feat)]     # F x (I, TB)

    # encode: hid[h][i, :] = relu(sum_f x[f][i, :] * W[i, h, f])
    # Unrolled add chain over f -> pure VALU on dense (I, TB) tiles.
    hid = []
    for h in range(n_hidden):
        pre = x[0] * w[h, 0]                                      # (I, TB)
        for f in range(1, n_feat):
            pre = pre + x[f] * w[h, f]
        hid.append(jnp.maximum(pre, 0.0))

    # decode: out[f][i, :] = sum_h hid[h][i, :] * W[i, h, f] + b_final[i, f]
    for f in range(n_feat):
        acc = hid[0] * w[0, f]                                    # (I, TB)
        for h in range(1, n_hidden):
            acc = acc + hid[h] * w[h, f]
        o_ref[f] = (acc + b[f]).astype(o_ref.dtype)               # contiguous lane-dense store


def model_forward(features, W, b_final, *, batch_tile=1024):
    """
    features: (batch, n_instances, n_features)   -- PyTorch layout
    W:        (n_instances, n_hidden, n_features)
    b_final:  (n_instances, n_features)
    returns:  (batch, n_instances, n_features)
    """
    B, I, F = features.shape
    I2, H, F2 = W.shape
    assert (I2, F2) == (I, F) and b_final.shape == (I, F)

    # Lane-dense relayout (layout plumbing only, done by XLA outside the kernel):
    # batch goes on the last (lane) axis, instances on sublanes.
    x_fib = jnp.transpose(features, (2, 1, 0))           # (F, I, B)
    w_hfi = jnp.transpose(W, (1, 2, 0))[..., None]       # (H, F, I, 1)
    b_fi = jnp.transpose(b_final, (1, 0))[..., None]     # (F, I, 1)

    tb = min(batch_tile, B)
    grid = (pl.cdiv(B, tb),)

    bytes_el = features.dtype.itemsize
    cost = pl.CostEstimate(
        flops=4 * B * I * H * F,
        transcendentals=0,
        bytes_accessed=2 * B * I * F * bytes_el + (I * H * F + I * F) * 4,
    )

    out_fib = pl.pallas_call(
        _model_kernel,
        out_shape=jax.ShapeDtypeStruct((F, I, B), features.dtype),
        grid_spec=pltpu.PrefetchScalarGridSpec(
            num_scalar_prefetch=0,
            grid=grid,
            in_specs=[
                pl.BlockSpec((F, I, tb), lambda bb: (0, 0, bb)),      # batch tile of x
                pl.BlockSpec((H, F, I, 1), lambda bb: (0, 0, 0, 0)),  # resident weights
                pl.BlockSpec((F, I, 1), lambda bb: (0, 0, 0)),        # resident bias
            ],
            out_specs=pl.BlockSpec((F, I, tb), lambda bb: (0, 0, bb)),
        ),
        compiler_params=pltpu.CompilerParams(
            dimension_semantics=("parallel",),
        ),
        cost_estimate=cost,
    )(x_fib, w_hfi, b_fi)

    return jnp.transpose(out_fib, (2, 1, 0))              # back to (B, I, F)


def _xavier_normal(key, n_instances, n_hidden, n_features):
    # torch.nn.init.xavier_normal_ on a 3D tensor:
    #   fan_in  = size(1) * receptive_field = n_hidden * n_features
    #   fan_out = size(0) * receptive_field = n_instances * n_features
    fan_in = n_hidden * n_features
    fan_out = n_instances * n_features
    std = (2.0 / (fan_in + fan_out)) ** 0.5
    return std * jax.random.normal(
        key, (n_instances, n_hidden, n_features), dtype=jnp.float32
    )


if __name__ == "__main__":
    # Config defaults: n_features=5, n_hidden=2.  B=256 fits a single grid step
    # (tb = 256, multiple of 128), which is the fastest configuration for this
    # tiny problem on all TPU generations.
    batch = 256
    n_instances = 8
    n_features = 5
    n_hidden = 2

    key = jax.random.PRNGKey(0)
    k_w, k_x, k_p = jax.random.split(key, 3)

    W = _xavier_normal(k_w, n_instances, n_hidden, n_features)
    b_final = jnp.zeros((n_instances, n_features), dtype=jnp.float32)

    # Sparse-ish features in [0, 1), same semantics as Model.generate_batch.
    feat = jax.random.uniform(k_x, (batch, n_instances, n_features), dtype=jnp.float32)
    present = jax.random.uniform(k_p, (batch, n_instances, n_features)) <= 0.5
    features = jnp.where(present, feat, 0.0)

    fwd = jax.jit(model_forward)
    out = jax.block_until_ready(fwd(features, W, b_final))

    # Pure-JAX reference of the module's forward pass.
    hidden_ref = jnp.maximum(jnp.einsum("bif,ihf->bih", features, W), 0.0)
    out_ref = jnp.einsum("bih,ihf->bif", hidden_ref, W) + b_final[None, :, :]

    assert out.shape == (batch, n_instances, n_features)
    assert jnp.allclose(out, out_ref, atol=1e-5, rtol=1e-5)

    print("KERNEL_OK")
</pallas_src>

<mosaic_0001>
module attributes {stable_mosaic.version = 11 : i64} {
  func.func @_model_kernel(%arg0: i32, %arg1: memref<5x8x256xf32, #tpu.memory_space<vmem>>, %arg2: memref<2x5x8x1xf32, #tpu.memory_space<vmem>>, %arg3: memref<5x8x1xf32, #tpu.memory_space<vmem>>, %arg4: memref<5x8x256xf32, #tpu.memory_space<vmem>>) attributes {dimension_semantics = [#tpu.dimension_semantics<parallel>], iteration_bounds = array<i64: 1>, scalar_prefetch = 0 : i64, scratch_operands = 0 : i64, tpu.core_type = #tpu.core_type<tc>, window_params = [{transform_indices = @transform_0, window_bounds = array<i64: 5, 8, 256>}, {pipeline_mode = #tpu.pipeline_mode<synchronous>, transform_indices = @transform_1, window_bounds = array<i64: 2, 5, 8, 1>}, {pipeline_mode = #tpu.pipeline_mode<synchronous>, transform_indices = @transform_2, window_bounds = array<i64: 5, 8, 1>}, {transform_indices = @transform_3, window_bounds = array<i64: 5, 8, 256>}]} {
    %c0 = arith.constant 0 : index
    %c0_0 = arith.constant 0 : index
    %c0_1 = arith.constant 0 : index
    %c0_2 = arith.constant 0 : index
    %0 = vector.load %arg2[%c0, %c0_0, %c0_1, %c0_2] : memref<2x5x8x1xf32, #tpu.memory_space<vmem>>, vector<2x5x8x1xf32>
    %c0_3 = arith.constant 0 : index
    %c0_4 = arith.constant 0 : index
    %c0_5 = arith.constant 0 : index
    %1 = vector.load %arg3[%c0_3, %c0_4, %c0_5] : memref<5x8x1xf32, #tpu.memory_space<vmem>>, vector<5x8x1xf32>
    %c0_6 = arith.constant 0 : index
    %c0_7 = arith.constant 0 : index
    %c0_8 = arith.constant 0 : index
    %2 = vector.load %arg1[%c0_6, %c0_7, %c0_8] : memref<5x8x256xf32, #tpu.memory_space<vmem>>, vector<1x8x256xf32>
    %3 = vector.shape_cast %2 : vector<1x8x256xf32> to vector<8x256xf32>
    %c1 = arith.constant 1 : index
    %c0_9 = arith.constant 0 : index
    %c0_10 = arith.constant 0 : index
    %4 = vector.load %arg1[%c1, %c0_9, %c0_10] : memref<5x8x256xf32, #tpu.memory_space<vmem>>, vector<1x8x256xf32>
    %5 = vector.shape_cast %4 : vector<1x8x256xf32> to vector<8x256xf32>
    %c2 = arith.constant 2 : index
    %c0_11 = arith.constant 0 : index
    %c0_12 = arith.constant 0 : index
    %6 = vector.load %arg1[%c2, %c0_11, %c0_12] : memref<5x8x256xf32, #tpu.memory_space<vmem>>, vector<1x8x256xf32>
    %7 = vector.shape_cast %6 : vector<1x8x256xf32> to vector<8x256xf32>
    %c3 = arith.constant 3 : index
    %c0_13 = arith.constant 0 : index
    %c0_14 = arith.constant 0 : index
    %8 = vector.load %arg1[%c3, %c0_13, %c0_14] : memref<5x8x256xf32, #tpu.memory_space<vmem>>, vector<1x8x256xf32>
    %9 = vector.shape_cast %8 : vector<1x8x256xf32> to vector<8x256xf32>
    %c4 = arith.constant 4 : index
    %c0_15 = arith.constant 0 : index
    %c0_16 = arith.constant 0 : index
    %10 = vector.load %arg1[%c4, %c0_15, %c0_16] : memref<5x8x256xf32, #tpu.memory_space<vmem>>, vector<1x8x256xf32>
    %11 = vector.shape_cast %10 : vector<1x8x256xf32> to vector<8x256xf32>
    %12 = vector.extract_strided_slice %0 {offsets = [0, 0, 0, 0], sizes = [1, 1, 8, 1], strides = [1, 1, 1, 1]} : vector<2x5x8x1xf32> to vector<1x1x8x1xf32>
    %13 = vector.shape_cast %12 : vector<1x1x8x1xf32> to vector<8x1xf32>
    %14 = vector.broadcast %13 : vector<8x1xf32> to vector<8x256xf32>
    %15 = arith.mulf %3, %14 : vector<8x256xf32>
    %16 = vector.extract_strided_slice %0 {offsets = [0, 1, 0, 0], sizes = [1, 1, 8, 1], strides = [1, 1, 1, 1]} : vector<2x5x8x1xf32> to vector<1x1x8x1xf32>
    %17 = vector.shape_cast %16 : vector<1x1x8x1xf32> to vector<8x1xf32>
    %18 = vector.broadcast %17 : vector<8x1xf32> to vector<8x256xf32>
    %19 = arith.mulf %5, %18 : vector<8x256xf32>
    %20 = arith.addf %15, %19 : vector<8x256xf32>
    %21 = vector.extract_strided_slice %0 {offsets = [0, 2, 0, 0], sizes = [1, 1, 8, 1], strides = [1, 1, 1, 1]} : vector<2x5x8x1xf32> to vector<1x1x8x1xf32>
    %22 = vector.shape_cast %21 : vector<1x1x8x1xf32> to vector<8x1xf32>
    %23 = vector.broadcast %22 : vector<8x1xf32> to vector<8x256xf32>
    %24 = arith.mulf %7, %23 : vector<8x256xf32>
    %25 = arith.addf %20, %24 : vector<8x256xf32>
    %26 = vector.extract_strided_slice %0 {offsets = [0, 3, 0, 0], sizes = [1, 1, 8, 1], strides = [1, 1, 1, 1]} : vector<2x5x8x1xf32> to vector<1x1x8x1xf32>
    %27 = vector.shape_cast %26 : vector<1x1x8x1xf32> to vector<8x1xf32>
    %28 = vector.broadcast %27 : vector<8x1xf32> to vector<8x256xf32>
    %29 = arith.mulf %9, %28 : vector<8x256xf32>
    %30 = arith.addf %25, %29 : vector<8x256xf32>
    %31 = vector.extract_strided_slice %0 {offsets = [0, 4, 0, 0], sizes = [1, 1, 8, 1], strides = [1, 1, 1, 1]} : vector<2x5x8x1xf32> to vector<1x1x8x1xf32>
    %32 = vector.shape_cast %31 : vector<1x1x8x1xf32> to vector<8x1xf32>
    %33 = vector.broadcast %32 : vector<8x1xf32> to vector<8x256xf32>
    %34 = arith.mulf %11, %33 : vector<8x256xf32>
    %35 = arith.addf %30, %34 : vector<8x256xf32>
    %cst = arith.constant 0.000000e+00 : f32
    %36 = vector.broadcast %cst : f32 to vector<8x256xf32>
    %37 = arith.maximumf %35, %36 : vector<8x256xf32>
    %38 = vector.extract_strided_slice %0 {offsets = [1, 0, 0, 0], sizes = [1, 1, 8, 1], strides = [1, 1, 1, 1]} : vector<2x5x8x1xf32> to vector<1x1x8x1xf32>
    %39 = vector.shape_cast %38 : vector<1x1x8x1xf32> to vector<8x1xf32>
    %40 = vector.broadcast %39 : vector<8x1xf32> to vector<8x256xf32>
    %41 = arith.mulf %3, %40 : vector<8x256xf32>
    %42 = vector.extract_strided_slice %0 {offsets = [1, 1, 0, 0], sizes = [1, 1, 8, 1], strides = [1, 1, 1, 1]} : vector<2x5x8x1xf32> to vector<1x1x8x1xf32>
    %43 = vector.shape_cast %42 : vector<1x1x8x1xf32> to vector<8x1xf32>
    %44 = vector.broadcast %43 : vector<8x1xf32> to vector<8x256xf32>
    %45 = arith.mulf %5, %44 : vector<8x256xf32>
    %46 = arith.addf %41, %45 : vector<8x256xf32>
    %47 = vector.extract_strided_slice %0 {offsets = [1, 2, 0, 0], sizes = [1, 1, 8, 1], strides = [1, 1, 1, 1]} : vector<2x5x8x1xf32> to vector<1x1x8x1xf32>
    %48 = vector.shape_cast %47 : vector<1x1x8x1xf32> to vector<8x1xf32>
    %49 = vector.broadcast %48 : vector<8x1xf32> to vector<8x256xf32>
    %50 = arith.mulf %7, %49 : vector<8x256xf32>
    %51 = arith.addf %46, %50 : vector<8x256xf32>
    %52 = vector.extract_strided_slice %0 {offsets = [1, 3, 0, 0], sizes = [1, 1, 8, 1], strides = [1, 1, 1, 1]} : vector<2x5x8x1xf32> to vector<1x1x8x1xf32>
    %53 = vector.shape_cast %52 : vector<1x1x8x1xf32> to vector<8x1xf32>
    %54 = vector.broadcast %53 : vector<8x1xf32> to vector<8x256xf32>
    %55 = arith.mulf %9, %54 : vector<8x256xf32>
    %56 = arith.addf %51, %55 : vector<8x256xf32>
    %57 = vector.extract_strided_slice %0 {offsets = [1, 4, 0, 0], sizes = [1, 1, 8, 1], strides = [1, 1, 1, 1]} : vector<2x5x8x1xf32> to vector<1x1x8x1xf32>
    %58 = vector.shape_cast %57 : vector<1x1x8x1xf32> to vector<8x1xf32>
    %59 = vector.broadcast %58 : vector<8x1xf32> to vector<8x256xf32>
    %60 = arith.mulf %11, %59 : vector<8x256xf32>
    %61 = arith.addf %56, %60 : vector<8x256xf32>
    %cst_17 = arith.constant 0.000000e+00 : f32
    %62 = vector.broadcast %cst_17 : f32 to vector<8x256xf32>
    %63 = arith.maximumf %61, %62 : vector<8x256xf32>
    %64 = vector.extract_strided_slice %0 {offsets = [0, 0, 0, 0], sizes = [1, 1, 8, 1], strides = [1, 1, 1, 1]} : vector<2x5x8x1xf32> to vector<1x1x8x1xf32>
    %65 = vector.shape_cast %64 : vector<1x1x8x1xf32> to vector<8x1xf32>
    %66 = vector.broadcast %65 : vector<8x1xf32> to vector<8x256xf32>
    %67 = arith.mulf %37, %66 : vector<8x256xf32>
    %68 = vector.extract_strided_slice %0 {offsets = [1, 0, 0, 0], sizes = [1, 1, 8, 1], strides = [1, 1, 1, 1]} : vector<2x5x8x1xf32> to vector<1x1x8x1xf32>
    %69 = vector.shape_cast %68 : vector<1x1x8x1xf32> to vector<8x1xf32>
    %70 = vector.broadcast %69 : vector<8x1xf32> to vector<8x256xf32>
    %71 = arith.mulf %63, %70 : vector<8x256xf32>
    %72 = arith.addf %67, %71 : vector<8x256xf32>
    %73 = vector.extract_strided_slice %1 {offsets = [0, 0, 0], sizes = [1, 8, 1], strides = [1, 1, 1]} : vector<5x8x1xf32> to vector<1x8x1xf32>
    %74 = vector.shape_cast %73 : vector<1x8x1xf32> to vector<8x1xf32>
    %75 = vector.broadcast %74 : vector<8x1xf32> to vector<8x256xf32>
    %76 = arith.addf %72, %75 : vector<8x256xf32>
    %c0_18 = arith.constant 0 : index
    %c0_19 = arith.constant 0 : index
    %c0_20 = arith.constant 0 : index
    %77 = vector.load %arg4[%c0_18, %c0_19, %c0_20] : memref<5x8x256xf32, #tpu.memory_space<vmem>>, vector<1x8x256xf32>
    %78 = vector.shape_cast %77 : vector<1x8x256xf32> to vector<8x256xf32>
    %79 = vector.shape_cast %76 : vector<8x256xf32> to vector<1x8x256xf32>
    tpu.vector_store %arg4[%c0_18, %c0_19, %c0_20], %79 {strides = array<i32>} : memref<5x8x256xf32, #tpu.memory_space<vmem>>, vector<1x8x256xf32>,
    %80 = vector.extract_strided_slice %0 {offsets = [0, 1, 0, 0], sizes = [1, 1, 8, 1], strides = [1, 1, 1, 1]} : vector<2x5x8x1xf32> to vector<1x1x8x1xf32>
    %81 = vector.shape_cast %80 : vector<1x1x8x1xf32> to vector<8x1xf32>
    %82 = vector.broadcast %81 : vector<8x1xf32> to vector<8x256xf32>
    %83 = arith.mulf %37, %82 : vector<8x256xf32>
    %84 = vector.extract_strided_slice %0 {offsets = [1, 1, 0, 0], sizes = [1, 1, 8, 1], strides = [1, 1, 1, 1]} : vector<2x5x8x1xf32> to vector<1x1x8x1xf32>
    %85 = vector.shape_cast %84 : vector<1x1x8x1xf32> to vector<8x1xf32>
    %86 = vector.broadcast %85 : vector<8x1xf32> to vector<8x256xf32>
    %87 = arith.mulf %63, %86 : vector<8x256xf32>
    %88 = arith.addf %83, %87 : vector<8x256xf32>
    %89 = vector.extract_strided_slice %1 {offsets = [1, 0, 0], sizes = [1, 8, 1], strides = [1, 1, 1]} : vector<5x8x1xf32> to vector<1x8x1xf32>
    %90 = vector.shape_cast %89 : vector<1x8x1xf32> to vector<8x1xf32>
    %91 = vector.broadcast %90 : vector<8x1xf32> to vector<8x256xf32>
    %92 = arith.addf %88, %91 : vector<8x256xf32>
    %c1_21 = arith.constant 1 : index
    %c0_22 = arith.constant 0 : index
    %c0_23 = arith.constant 0 : index
    %93 = vector.load %arg4[%c1_21, %c0_22, %c0_23] : memref<5x8x256xf32, #tpu.memory_space<vmem>>, vector<1x8x256xf32>
    %94 = vector.shape_cast %93 : vector<1x8x256xf32> to vector<8x256xf32>
    %95 = vector.shape_cast %92 : vector<8x256xf32> to vector<1x8x256xf32>
    tpu.vector_store %arg4[%c1_21, %c0_22, %c0_23], %95 {strides = array<i32>} : memref<5x8x256xf32, #tpu.memory_space<vmem>>, vector<1x8x256xf32>,
    %96 = vector.extract_strided_slice %0 {offsets = [0, 2, 0, 0], sizes = [1, 1, 8, 1], strides = [1, 1, 1, 1]} : vector<2x5x8x1xf32> to vector<1x1x8x1xf32>
    %97 = vector.shape_cast %96 : vector<1x1x8x1xf32> to vector<8x1xf32>
    %98 = vector.broadcast %97 : vector<8x1xf32> to vector<8x256xf32>
    %99 = arith.mulf %37, %98 : vector<8x256xf32>
    %100 = vector.extract_strided_slice %0 {offsets = [1, 2, 0, 0], sizes = [1, 1, 8, 1], strides = [1, 1, 1, 1]} : vector<2x5x8x1xf32> to vector<1x1x8x1xf32>
    %101 = vector.shape_cast %100 : vector<1x1x8x1xf32> to vector<8x1xf32>
    %102 = vector.broadcast %101 : vector<8x1xf32> to vector<8x256xf32>
    %103 = arith.mulf %63, %102 : vector<8x256xf32>
    %104 = arith.addf %99, %103 : vector<8x256xf32>
    %105 = vector.extract_strided_slice %1 {offsets = [2, 0, 0], sizes = [1, 8, 1], strides = [1, 1, 1]} : vector<5x8x1xf32> to vector<1x8x1xf32>
    %106 = vector.shape_cast %105 : vector<1x8x1xf32> to vector<8x1xf32>
    %107 = vector.broadcast %106 : vector<8x1xf32> to vector<8x256xf32>
    %108 = arith.addf %104, %107 : vector<8x256xf32>
    %c2_24 = arith.constant 2 : index
    %c0_25 = arith.constant 0 : index
    %c0_26 = arith.constant 0 : index
    %109 = vector.load %arg4[%c2_24, %c0_25, %c0_26] : memref<5x8x256xf32, #tpu.memory_space<vmem>>, vector<1x8x256xf32>
    %110 = vector.shape_cast %109 : vector<1x8x256xf32> to vector<8x256xf32>
    %111 = vector.shape_cast %108 : vector<8x256xf32> to vector<1x8x256xf32>
    tpu.vector_store %arg4[%c2_24, %c0_25, %c0_26], %111 {strides = array<i32>} : memref<5x8x256xf32, #tpu.memory_space<vmem>>, vector<1x8x256xf32>,
    %112 = vector.extract_strided_slice %0 {offsets = [0, 3, 0, 0], sizes = [1, 1, 8, 1], strides = [1, 1, 1, 1]} : vector<2x5x8x1xf32> to vector<1x1x8x1xf32>
    %113 = vector.shape_cast %112 : vector<1x1x8x1xf32> to vector<8x1xf32>
    %114 = vector.broadcast %113 : vector<8x1xf32> to vector<8x256xf32>
    %115 = arith.mulf %37, %114 : vector<8x256xf32>
    %116 = vector.extract_strided_slice %0 {offsets = [1, 3, 0, 0], sizes = [1, 1, 8, 1], strides = [1, 1, 1, 1]} : vector<2x5x8x1xf32> to vector<1x1x8x1xf32>
    %117 = vector.shape_cast %116 : vector<1x1x8x1xf32> to vector<8x1xf32>
    %118 = vector.broadcast %117 : vector<8x1xf32> to vector<8x256xf32>
    %119 = arith.mulf %63, %118 : vector<8x256xf32>
    %120 = arith.addf %115, %119 : vector<8x256xf32>
    %121 = vector.extract_strided_slice %1 {offsets = [3, 0, 0], sizes = [1, 8, 1], strides = [1, 1, 1]} : vector<5x8x1xf32> to vector<1x8x1xf32>
    %122 = vector.shape_cast %121 : vector<1x8x1xf32> to vector<8x1xf32>
    %123 = vector.broadcast %122 : vector<8x1xf32> to vector<8x256xf32>
    %124 = arith.addf %120, %123 : vector<8x256xf32>
    %c3_27 = arith.constant 3 : index
    %c0_28 = arith.constant 0 : index
    %c0_29 = arith.constant 0 : index
    %125 = vector.load %arg4[%c3_27, %c0_28, %c0_29] : memref<5x8x256xf32, #tpu.memory_space<vmem>>, vector<1x8x256xf32>
    %126 = vector.shape_cast %125 : vector<1x8x256xf32> to vector<8x256xf32>
    %127 = vector.shape_cast %124 : vector<8x256xf32> to vector<1x8x256xf32>
    tpu.vector_store %arg4[%c3_27, %c0_28, %c0_29], %127 {strides = array<i32>} : memref<5x8x256xf32, #tpu.memory_space<vmem>>, vector<1x8x256xf32>,
    %128 = vector.extract_strided_slice %0 {offsets = [0, 4, 0, 0], sizes = [1, 1, 8, 1], strides = [1, 1, 1, 1]} : vector<2x5x8x1xf32> to vector<1x1x8x1xf32>
    %129 = vector.shape_cast %128 : vector<1x1x8x1xf32> to vector<8x1xf32>
    %130 = vector.broadcast %129 : vector<8x1xf32> to vector<8x256xf32>
    %131 = arith.mulf %37, %130 : vector<8x256xf32>
    %132 = vector.extract_strided_slice %0 {offsets = [1, 4, 0, 0], sizes = [1, 1, 8, 1], strides = [1, 1, 1, 1]} : vector<2x5x8x1xf32> to vector<1x1x8x1xf32>
    %133 = vector.shape_cast %132 : vector<1x1x8x1xf32> to vector<8x1xf32>
    %134 = vector.broadcast %133 : vector<8x1xf32> to vector<8x256xf32>
    %135 = arith.mulf %63, %134 : vector<8x256xf32>
    %136 = arith.addf %131, %135 : vector<8x256xf32>
    %137 = vector.extract_strided_slice %1 {offsets = [4, 0, 0], sizes = [1, 8, 1], strides = [1, 1, 1]} : vector<5x8x1xf32> to vector<1x8x1xf32>
    %138 = vector.shape_cast %137 : vector<1x8x1xf32> to vector<8x1xf32>
    %139 = vector.broadcast %138 : vector<8x1xf32> to vector<8x256xf32>
    %140 = arith.addf %136, %139 : vector<8x256xf32>
    %c4_30 = arith.constant 4 : index
    %c0_31 = arith.constant 0 : index
    %c0_32 = arith.constant 0 : index
    %141 = vector.load %arg4[%c4_30, %c0_31, %c0_32] : memref<5x8x256xf32, #tpu.memory_space<vmem>>, vector<1x8x256xf32>
    %142 = vector.shape_cast %141 : vector<1x8x256xf32> to vector<8x256xf32>
    %143 = vector.shape_cast %140 : vector<8x256xf32> to vector<1x8x256xf32>
    tpu.vector_store %arg4[%c4_30, %c0_31, %c0_32], %143 {strides = array<i32>} : memref<5x8x256xf32, #tpu.memory_space<vmem>>, vector<1x8x256xf32>,
    return
  }
  func.func @transform_0(%arg0: i32) -> (i32, i32, i32) {
    %c0_i32 = arith.constant 0 : i32
    %c0_i32_0 = arith.constant 0 : i32
    %c0_i32_1 = arith.constant 0 : i32
    return %c0_i32, %c0_i32_0, %arg0 : i32, i32, i32
  }
  func.func @transform_1(%arg0: i32) -> (i32, i32, i32, i32) {
    %c0_i32 = arith.constant 0 : i32
    %c0_i32_0 = arith.constant 0 : i32
    %c0_i32_1 = arith.constant 0 : i32
    %c0_i32_2 = arith.constant 0 : i32
    %c0_i32_3 = arith.constant 0 : i32
    return %c0_i32, %c0_i32_0, %c0_i32_1, %c0_i32_2 : i32, i32, i32, i32
  }
  func.func @transform_2(%arg0: i32) -> (i32, i32, i32) {
    %c0_i32 = arith.constant 0 : i32
    %c0_i32_0 = arith.constant 0 : i32
    %c0_i32_1 = arith.constant 0 : i32
    %c0_i32_2 = arith.constant 0 : i32
    return %c0_i32, %c0_i32_0, %c0_i32_1 : i32, i32, i32
  }
  func.func @transform_3(%arg0: i32) -> (i32, i32, i32) {
    %c0_i32 = arith.constant 0 : i32
    %c0_i32_0 = arith.constant 0 : i32
    %c0_i32_1 = arith.constant 0 : i32
    return %c0_i32, %c0_i32_0, %arg0 : i32, i32, i32
  }
}

</mosaic_0001>

<llo_original>
// kernel: model_forward.1
$region0: #{model_forward.1}
  #allocation0 [shape = 'u32[]', space=smem, size = 0x4, offset = 0x4, fixed_abs, tag = 'smem constant byte address 0x4 - core index']
  #allocation1 [shape = 'u32[144,128]{1,0:T(1,128)}', space=vmem, size = 0x12000, scoped, tag = 'internal scratch']
  %s0 = inlined_call_operand.vmem [shape: f32[5,8,256], index: 0, kind: input, shape index: {}]
  %s1 = inlined_call_operand.vmem [shape: f32[2,5,8,1], index: 1, kind: input, shape index: {}]
  %s2 = inlined_call_operand.vmem [shape: f32[5,8,1], index: 2, kind: input, shape index: {}]
  %s3 = inlined_call_operand.hbm [shape: f32[5,8,256], index: 3, kind: output, shape index: {}]
  %s4 = sld [smem:[#allocation0]]
  $region22: #{model_forward.1} parent=0
    _
  %s6 = ssub.s32 1, %s4
  %s7 = scalar_select 0, %s6, %s4
  $region1: #{model_forward.1} parent=0
    #allocation2 [shape = 'u8[40960]{0}', space=vmem, size = 0xa000, scoped, tag = 'output window, operand 0, single buffered']
    #allocation3 [shape = 's32[1]{0}', space=sflag, size = 0x4, scoped, tag = 'scoped memory for model_forward.1']
    %8 = vsyncpa [#allocation3], 0
    // Predicated region
    $region2: #{model_forward.1} parent=1 // pred_check
      _
    $region3: #{model_forward.1} parent=1 // pred_check_branch
      %10 = sbr.rel (0) target = $region5
    $region4: #{model_forward.1} parent=1 // pred_region
      _
    $region5: #{model_forward.1} parent=1 // pred_fallthru
      _
    // Predicated region
    $region6: #{model_forward.1} parent=1 // pred_check
      _
    $region7: #{model_forward.1} parent=1 // pred_check_branch
      %12 = sbr.rel (0) target = $region9
    $region8: #{model_forward.1} parent=1 // pred_region
      _
    $region9: #{model_forward.1} parent=1 // pred_fallthru
      _
    // Predicated region
    $region10: #{model_forward.1} parent=1 // pred_check
      _
    $region11: #{model_forward.1} parent=1 // pred_check_branch
      %14 = sbr.rel (0) target = $region13
    $region12: #{model_forward.1} parent=1 // pred_region
      _
    $region13: #{model_forward.1} parent=1 // pred_fallthru
      _
    %v15 = vld [vmem:[%s1] sm:$0xff]
    %v16 = vld [vmem:[%s1 + $0x8] sm:$0xff]
    %v17 = vld [vmem:[%s1 + $0x10] sm:$0xff]
    %v18 = vld [vmem:[%s1 + $0x18] sm:$0xff]
    %v19 = vld [vmem:[%s1 + $0x20] sm:$0xff]
    %v20 = vld [vmem:[%s1 + $0x28] sm:$0xff]
    %v21 = vld [vmem:[%s1 + $0x30] sm:$0xff]
    %v22 = vld [vmem:[%s1 + $0x38] sm:$0xff]
    %v23 = vld [vmem:[%s1 + $0x40] sm:$0xff]
    %v24 = vld [vmem:[%s1 + $0x48] sm:$0xff]
    %v25 = vld [vmem:[%s2] sm:$0xff]
    %v26 = vld [vmem:[%s2 + $0x8] sm:$0xff]
    %v27 = vld [vmem:[%s2 + $0x10] sm:$0xff]
    %v28 = vld [vmem:[%s2 + $0x18] sm:$0xff]
    %v29 = vld [vmem:[%s2 + $0x20] sm:$0xff]
    %v30 = vld [vmem:[%s0] sm:$0xff]
    %v31 = vld [vmem:[%s0 + $0x8] sm:$0xff]
    %s32 = scalar_lea.vmem %s0, 16
    %v33 = vld [vmem:[%s32] sm:$0xff]
    %v34 = vld [vmem:[%s32 + $0x8] sm:$0xff]
    %s35 = scalar_lea.vmem %s0, 32
    %v36 = vld [vmem:[%s35] sm:$0xff]
    %v37 = vld [vmem:[%s35 + $0x8] sm:$0xff]
    %s38 = scalar_lea.vmem %s0, 48
    %v39 = vld [vmem:[%s38] sm:$0xff]
    %v40 = vld [vmem:[%s38 + $0x8] sm:$0xff]
    %s41 = scalar_lea.vmem %s0, 64
    %v42 = vld [vmem:[%s41] sm:$0xff]
    %v43 = vld [vmem:[%s41 + $0x8] sm:$0xff]
    %45 = vset.pattern.permute.xlu0 0
    %46 = vperm.xlu0 %45, %v15
    %v47 = vpop.permute.xlu0 %46
    %v49 = vmul.f32 %v30, %v47
    %v50 = vmul.f32 %v31, %v47
    %52 = vset.pattern.permute.xlu0 0
    %53 = vperm.xlu0 %52, %v16
    %v54 = vpop.permute.xlu0 %53
    %v56 = vmul.f32 %v33, %v54
    %v57 = vmul.f32 %v34, %v54
    %v58 = vadd.f32 %v49, %v56
    %v59 = vadd.f32 %v50, %v57
    %61 = vset.pattern.permute.xlu0 0
    %62 = vperm.xlu0 %61, %v17
    %v63 = vpop.permute.xlu0 %62
    %v65 = vmul.f32 %v36, %v63
    %v66 = vmul.f32 %v37, %v63
    %v67 = vadd.f32 %v58, %v65
    %v68 = vadd.f32 %v59, %v66
    %70 = vset.pattern.permute.xlu0 0
    %71 = vperm.xlu0 %70, %v18
    %v72 = vpop.permute.xlu0 %71
    %v74 = vmul.f32 %v39, %v72
    %v75 = vmul.f32 %v40, %v72
    %v76 = vadd.f32 %v67, %v74
    %v77 = vadd.f32 %v68, %v75
    %79 = vset.pattern.permute.xlu0 0
    %80 = vperm.xlu0 %79, %v19
    %v81 = vpop.permute.xlu0 %80
    %v83 = vmul.f32 %v42, %v81
    %v84 = vmul.f32 %v43, %v81
    %v85 = vadd.f32 %v76, %v83
    %v86 = vadd.f32 %v77, %v84
    %v87 = vmax.f32 %v85, 0.0
    %v88 = vmax.f32 %v86, 0.0
    %90 = vset.pattern.permute.xlu0 0
    %91 = vperm.xlu0 %90, %v20
    %v92 = vpop.permute.xlu0 %91
    %v94 = vmul.f32 %v30, %v92
    %v95 = vmul.f32 %v31, %v92
    %97 = vset.pattern.permute.xlu0 0
    %98 = vperm.xlu0 %97, %v21
    %v99 = vpop.permute.xlu0 %98
    %v101 = vmul.f32 %v33, %v99
    %v102 = vmul.f32 %v34, %v99
    %v103 = vadd.f32 %v94, %v101
    %v104 = vadd.f32 %v95, %v102
    %106 = vset.pattern.permute.xlu0 0
    %107 = vperm.xlu0 %106, %v22
    %v108 = vpop.permute.xlu0 %107
    %v110 = vmul.f32 %v36, %v108
    %v111 = vmul.f32 %v37, %v108
    %v112 = vadd.f32 %v103, %v110
    %v113 = vadd.f32 %v104, %v111
    %115 = vset.pattern.permute.xlu0 0
    %116 = vperm.xlu0 %115, %v23
    %v117 = vpop.permute.xlu0 %116
    %v119 = vmul.f32 %v39, %v117
    %v120 = vmul.f32 %v40, %v117
    %v121 = vadd.f32 %v112, %v119
    %v122 = vadd.f32 %v113, %v120
    %124 = vset.pattern.permute.xlu0 0
    %125 = vperm.xlu0 %124, %v24
    %v126 = vpop.permute.xlu0 %125
    %v128 = vmul.f32 %v42, %v126
    %v129 = vmul.f32 %v43, %v126
    %v130 = vadd.f32 %v121, %v128
    %v131 = vadd.f32 %v122, %v129
    %v132 = vmax.f32 %v130, 0.0
    %v133 = vmax.f32 %v131, 0.0
    %v134 = vmul.f32 %v87, %v47
    %v135 = vmul.f32 %v88, %v47
    %v136 = vmul.f32 %v132, %v92
    %v137 = vmul.f32 %v133, %v92
    %v138 = vadd.f32 %v134, %v136
    %v139 = vadd.f32 %v135, %v137
    %141 = vset.pattern.permute.xlu0 0
    %142 = vperm.xlu0 %141, %v25
    %v143 = vpop.permute.xlu0 %142
    %v145 = vadd.f32 %v138, %v143
    %v146 = vadd.f32 %v139, %v143
    %147 = vst [vmem:[#allocation2] sm:$0xff] %v145
    %148 = vst [vmem:[#allocation2 + $0x8] sm:$0xff] %v146
    %v149 = vmul.f32 %v87, %v54
    %v150 = vmul.f32 %v88, %v54
    %v151 = vmul.f32 %v132, %v99
    %v152 = vmul.f32 %v133, %v99
    %v153 = vadd.f32 %v149, %v151
    %v154 = vadd.f32 %v150, %v152
    %156 = vset.pattern.permute.xlu0 0
    %157 = vperm.xlu0 %156, %v26
    %v158 = vpop.permute.xlu0 %157
    %v160 = vadd.f32 %v153, %v158
    %v161 = vadd.f32 %v154, %v158
    %s162 = scalar_lea.vmem [#allocation2], 16
    %163 = vst [vmem:[%s162] sm:$0xff] %v160
    %164 = vst [vmem:[%s162 + $0x8] sm:$0xff] %v161
    %v165 = vmul.f32 %v87, %v63
    %v166 = vmul.f32 %v88, %v63
    %v167 = vmul.f32 %v132, %v108
    %v168 = vmul.f32 %v133, %v108
    %v169 = vadd.f32 %v165, %v167
    %v170 = vadd.f32 %v166, %v168
    %172 = vset.pattern.permute.xlu0 0
    %173 = vperm.xlu0 %172, %v27
    %v174 = vpop.permute.xlu0 %173
    %v176 = vadd.f32 %v169, %v174
    %v177 = vadd.f32 %v170, %v174
    %s178 = scalar_lea.vmem [#allocation2], 32
    %179 = vst [vmem:[%s178] sm:$0xff] %v176
    %180 = vst [vmem:[%s178 + $0x8] sm:$0xff] %v177
    %v181 = vmul.f32 %v87, %v72
    %v182 = vmul.f32 %v88, %v72
    %v183 = vmul.f32 %v132, %v117
    %v184 = vmul.f32 %v133, %v117
    %v185 = vadd.f32 %v181, %v183
    %v186 = vadd.f32 %v182, %v184
    %188 = vset.pattern.permute.xlu0 0
    %189 = vperm.xlu0 %188, %v28
    %v190 = vpop.permute.xlu0 %189
    %v192 = vadd.f32 %v185, %v190
    %v193 = vadd.f32 %v186, %v190
    %s194 = scalar_lea.vmem [#allocation2], 48
    %195 = vst [vmem:[%s194] sm:$0xff] %v192
    %196 = vst [vmem:[%s194 + $0x8] sm:$0xff] %v193
    %v197 = vmul.f32 %v87, %v81
    %v198 = vmul.f32 %v88, %v81
    %v199 = vmul.f32 %v132, %v126
    %v200 = vmul.f32 %v133, %v126
    %v201 = vadd.f32 %v197, %v199
    %v202 = vadd.f32 %v198, %v200
    %204 = vset.pattern.permute.xlu0 0
    %205 = vperm.xlu0 %204, %v29
    %v206 = vpop.permute.xlu0 %205
    %v208 = vadd.f32 %v201, %v206
    %v209 = vadd.f32 %v202, %v206
    %s210 = scalar_lea.vmem [#allocation2], 64
    %211 = vst [vmem:[%s210] sm:$0xff] %v208
    %212 = vst [vmem:[%s210 + $0x8] sm:$0xff] %v209
    // Predicated region
    $region14: #{model_forward.1} parent=1 // pred_check
      _
    $region15: #{model_forward.1} parent=1 // pred_check_branch
      %214 = sbr.rel (0) target = $region17
    $region16: #{model_forward.1} parent=1 // pred_region
      %s216 = ssub.s32 1280, 1280
      %217 = vsyncadd [#allocation3], %s216
      %s218 = sshll.u32 [#allocation2], 4
      %s219 = int_to_ptr.vmem [resolvable:$true] %s218
      %224 = dma.vmem_to_hbm [thread:$0]  %s219, 1280, %s3, [#allocation3], 256, 256, 16
    $region17: #{model_forward.1} parent=1 // pred_fallthru
      _
    // Predicated region
    $region18: #{model_forward.1} parent=1 // pred_check
      _
    $region19: #{model_forward.1} parent=1 // pred_check_branch
      %226 = sbr.rel (0) target = $region21
    $region20: #{model_forward.1} parent=1 // pred_region
      %227 = dma.done [#allocation3], 1280
    $region21: #{model_forward.1} parent=1 // pred_fallthru
      _
    %228 = vsyncpa [#allocation3], 1

</llo_original>
